<compile_context>
chip_gen: v7x
topology: tpu7x:2x2x1
jax: 0.10.0
libtpu: 0.0.40
codegen_flags: <defaults>
</compile_context>

<pallas_src>
import functools

import jax
import jax.numpy as jnp
from jax import lax
from jax.experimental import pallas as pl
from jax.experimental.pallas import tpu as pltpu

_MIB = 1 << 20


def _vmem_capacity_bytes():
    """Physical VMEM per TensorCore (128 MiB on v5e/v6e, 64 MiB on v7x)."""
    try:
        info = pltpu.get_tpu_info()
        return int(getattr(info, "vmem_capacity_bytes", 128 * _MIB))
    except Exception:
        return 128 * _MIB


# --------------------------------------------------------------------------------------
# Fused single-pass path: whole (TB, C, L) block resident in VMEM per grid step.
# --------------------------------------------------------------------------------------

def _fused_kernel(x_ref, w1_ref, b1_ref, w2_ref, b2_ref, o_ref):
    """One batch tile: pool over L, fused two-branch MLP gate, broadcast multiply."""
    x = x_ref[...]                                     # (TB, C, L) in input dtype
    tb = x.shape[0]

    # AdaptiveAvgPool1d(1) / AdaptiveMaxPool1d(1): reductions over the lane (L) axis.
    # Accumulate the mean in f32 (matters for bf16 inputs with long L); max is exact.
    avg = jnp.mean(x.astype(jnp.float32), axis=-1)     # (TB, C) f32
    mx = jnp.max(x, axis=-1).astype(jnp.float32)       # (TB, C) f32

    # Fused MLP: both branches with one matmul pair (stacked along sublanes).
    pooled = jnp.concatenate([avg, mx], axis=0)        # (2*TB, C)
    h = jnp.dot(pooled, w1_ref[...], preferred_element_type=jnp.float32) + b1_ref[...]
    h = jnp.maximum(h, 0.0)                            # ReLU (dropout = identity, eval)
    y = jnp.dot(h, w2_ref[...], preferred_element_type=jnp.float32) + b2_ref[...]

    gate = jax.nn.sigmoid(y[:tb] + y[tb:])             # (TB, C) f32

    # Keep the big elementwise multiply in the input dtype (bf16 stays bf16).
    o_ref[...] = x * gate.astype(o_ref.dtype)[:, :, None]


def _fused_path(x, w1, b1, w2, b2, budget, cap, batch_tile, donate_x):
    B, C, L = x.shape
    H = w1.shape[1]
    dbytes = x.dtype.itemsize
    per_batch = C * L * dbytes

    if batch_tile is not None:
        TB = max(1, min(B, int(batch_tile)))
    else:
        tb_budget = max(1, budget // per_batch)        # biggest block under the budget
        tb_pipeline = max(1, B // 4)                   # keep >=4 grid steps when possible
        TB = max(1, min(B, tb_budget, tb_pipeline))
    nb = pl.cdiv(B, TB)

    block_bytes = TB * per_batch
    param_bytes = (C * H + H + H * C + C) * 4
    vmem_needed = 4 * block_bytes + 2 * param_bytes + 2 * _MIB   # dbl-buffered io + slack
    vmem_limit = int(min(max(vmem_needed, 16 * _MIB), cap - 12 * _MIB))

    x_spec = pl.BlockSpec((TB, C, L), lambda b: (b, 0, 0))

    cost = pl.CostEstimate(
        flops=8 * B * C * H,                           # two tiny matmuls per branch pair
        transcendentals=B * C,                         # sigmoid
        bytes_accessed=2 * B * C * L * dbytes + param_bytes,
    )

    return pl.pallas_call(
        _fused_kernel,
        out_shape=jax.ShapeDtypeStruct((B, C, L), x.dtype),
        grid=(nb,),
        in_specs=[
            x_spec,                                            # x          (TB, C, L)
            pl.BlockSpec((C, H), lambda b: (0, 0)),            # w1 = fc1.weight.T
            pl.BlockSpec((1, H), lambda b: (0, 0)),            # b1
            pl.BlockSpec((H, C), lambda b: (0, 0)),            # w2 = fc2.weight.T
            pl.BlockSpec((1, C), lambda b: (0, 0)),            # b2
        ],
        out_specs=x_spec,
        compiler_params=pltpu.CompilerParams(
            dimension_semantics=("parallel",),                 # megacore: shard batch
            vmem_limit_bytes=vmem_limit,
        ),
        cost_estimate=cost,
        input_output_aliases=({0: 0} if donate_x else {}),
    )(x, w1, b1, w2, b2)


# --------------------------------------------------------------------------------------
# L-chunked two-pass fallback for large C*L (single batch row does not fit the budget).
# --------------------------------------------------------------------------------------

def _pool_chunk_kernel(x_ref, sum_ref, max_ref, *, seq_len, chunk):
    """Running sum/max over L chunks; outputs are resident across the L grid axis."""
    l = pl.program_id(1)
    x = x_ref[...]                                     # (1, C, TL)
    xf = x.astype(jnp.float32)

    if seq_len % chunk != 0:
        # Mask the padded tail of the last (partial) chunk.
        pos = lax.broadcasted_iota(jnp.int32, xf.shape, 2) + l * chunk
        valid = pos < seq_len
        s = jnp.sum(jnp.where(valid, xf, 0.0), axis=-1)            # (1, C)
        m = jnp.max(jnp.where(valid, xf, -jnp.inf), axis=-1)       # (1, C)
    else:
        s = jnp.sum(xf, axis=-1)
        m = jnp.max(xf, axis=-1)

    s = s[:, None, :]                                  # (1, 1, C)
    m = m[:, None, :]

    @pl.when(l == 0)
    def _():
        sum_ref[...] = s
        max_ref[...] = m

    @pl.when(l > 0)
    def _():
        sum_ref[...] = sum_ref[...] + s
        max_ref[...] = jnp.maximum(max_ref[...], m)


def _scale_chunk_kernel(x_ref, gate_ref, o_ref):
    """Apply the per-(batch, channel) gate to one L chunk."""
    o_ref[...] = x_ref[...] * gate_ref[...].astype(o_ref.dtype)    # broadcast over L


def _chunked_path(x, w1, b1, w2, b2, budget, cap):
    B, C, L = x.shape
    dbytes = x.dtype.itemsize

    # Lane-dense L chunk: multiple of 128, as large as the block budget allows.
    TL = max(128, (budget // (C * dbytes)) // 128 * 128)
    TL = min(TL, L)
    nl = pl.cdiv(L, TL)

    block_bytes = C * TL * dbytes
    vmem_needed = 4 * block_bytes + 8 * C * 4 + 2 * _MIB
    vmem_limit = int(min(max(vmem_needed, 16 * _MIB), cap - 12 * _MIB))

    x_spec = pl.BlockSpec((1, C, TL), lambda b, l: (b, 0, l))
    pooled_spec = pl.BlockSpec((1, 1, C), lambda b, l: (b, 0, 0))

    # Pass 1: pooled statistics (sum and max over L), accumulated across L chunks.
    sum_out, max_out = pl.pallas_call(
        functools.partial(_pool_chunk_kernel, seq_len=L, chunk=TL),
        out_shape=(jax.ShapeDtypeStruct((B, 1, C), jnp.float32),
                   jax.ShapeDtypeStruct((B, 1, C), jnp.float32)),
        grid=(B, nl),
        in_specs=[x_spec],
        out_specs=(pooled_spec, pooled_spec),
        compiler_params=pltpu.CompilerParams(
            dimension_semantics=("parallel", "arbitrary"),
            vmem_limit_bytes=vmem_limit,
        ),
    )(x)

    # Tiny (B, C) gate MLP: negligible next to the two HBM-bound passes, left to XLA.
    avg = sum_out[:, 0, :] / jnp.float32(L)
    mx = max_out[:, 0, :]
    w1f, w2f = w1.astype(jnp.float32), w2.astype(jnp.float32)
    mlp = lambda v: jnp.maximum(v @ w1f + b1, 0.0) @ w2f + b2
    gate = jax.nn.sigmoid(mlp(avg) + mlp(mx))[:, :, None]          # (B, C, 1) f32

    # Pass 2: broadcast multiply, gridded identically (both axes independent).
    return pl.pallas_call(
        _scale_chunk_kernel,
        out_shape=jax.ShapeDtypeStruct((B, C, L), x.dtype),
        grid=(B, nl),
        in_specs=[x_spec, pl.BlockSpec((1, C, 1), lambda b, l: (b, 0, 0))],
        out_specs=x_spec,
        compiler_params=pltpu.CompilerParams(
            dimension_semantics=("parallel", "parallel"),
            vmem_limit_bytes=vmem_limit,
        ),
    )(x, gate)


# --------------------------------------------------------------------------------------
# Public wrapper
# --------------------------------------------------------------------------------------

def channel_attention_1d(x, w1, b1, w2, b2, *, block_budget_bytes=None,
                         batch_tile=None, donate_x=False):
    """x: (B, C, L); w1 = fc1.weight.T (C, H); b1 (1, H); w2 = fc2.weight.T (H, C); b2 (1, C)."""
    B, C, L = x.shape
    dbytes = x.dtype.itemsize
    cap = _vmem_capacity_bytes()
    budget = int(block_budget_bytes) if block_budget_bytes is not None else cap // 8
    per_batch_bytes = C * L * dbytes

    if per_batch_bytes <= budget or L < 128:
        return _fused_path(x, w1, b1, w2, b2, budget, cap, batch_tile, donate_x)
    return _chunked_path(x, w1, b1, w2, b2, budget, cap)


def _reference(x, w1, b1, w2, b2):
    avg = jnp.mean(x, axis=-1)
    mx = jnp.max(x, axis=-1)
    mlp = lambda v: jnp.maximum(v @ w1 + b1, 0.0) @ w2 + b2
    gate = jax.nn.sigmoid(mlp(avg) + mlp(mx))
    return x * gate[:, :, None]


if __name__ == "__main__":
    key = jax.random.PRNGKey(0)

    # ---- Test 1: small shape, fused single-pass path --------------------------------
    B, C, L = 2, 32, 16
    H = C // 8
    kx, kw1, kb1, kw2, kb2, k2 = jax.random.split(key, 6)

    x = jax.random.normal(kx, (B, C, L), dtype=jnp.float32)
    w1 = jax.random.normal(kw1, (C, H), dtype=jnp.float32) * 0.1   # fc1.weight.T
    b1 = jax.random.normal(kb1, (1, H), dtype=jnp.float32) * 0.1
    w2 = jax.random.normal(kw2, (H, C), dtype=jnp.float32) * 0.1   # fc2.weight.T
    b2 = jax.random.normal(kb2, (1, C), dtype=jnp.float32) * 0.1

    out = jax.block_until_ready(channel_attention_1d(x, w1, b1, w2, b2))
    ref = _reference(x, w1, b1, w2, b2)
    assert out.shape == (B, C, L)
    assert jnp.allclose(out, ref, atol=1e-5, rtol=1e-5)

    # ---- Test 2: force the L-chunked two-pass fallback (incl. partial last chunk) ----
    B2, C2, L2 = 3, 256, 320
    H2 = C2 // 8
    kx2, kw12, kb12, kw22, kb22 = jax.random.split(k2, 5)

    x2 = jax.random.normal(kx2, (B2, C2, L2), dtype=jnp.float32)
    w12 = jax.random.normal(kw12, (C2, H2), dtype=jnp.float32) * 0.05
    b12 = jax.random.normal(kb12, (1, H2), dtype=jnp.float32) * 0.05
    w22 = jax.random.normal(kw22, (H2, C2), dtype=jnp.float32) * 0.05
    b22 = jax.random.normal(kb22, (1, C2), dtype=jnp.float32) * 0.05

    # Tiny artificial block budget (C2 * 128 * 4 bytes) routes through the chunked path.
    out2 = jax.block_until_ready(
        channel_attention_1d(x2, w12, b12, w22, b22,
                             block_budget_bytes=C2 * 128 * 4))
    ref2 = _reference(x2, w12, b12, w22, b22)
    assert out2.shape == (B2, C2, L2)
    assert jnp.allclose(out2, ref2, atol=1e-4, rtol=1e-4)

    print("KERNEL_OK")
</pallas_src>

<mosaic_0001>
module attributes {stable_mosaic.version = 11 : i64} {
  func.func @_fused_kernel(%arg0: i32, %arg1: memref<1x32x16xf32, #tpu.memory_space<vmem>>, %arg2: memref<32x4xf32, #tpu.memory_space<vmem>>, %arg3: memref<1x4xf32, #tpu.memory_space<vmem>>, %arg4: memref<4x32xf32, #tpu.memory_space<vmem>>, %arg5: memref<1x32xf32, #tpu.memory_space<vmem>>, %arg6: memref<1x32x16xf32, #tpu.memory_space<vmem>>) attributes {dimension_semantics = [#tpu.dimension_semantics<parallel>], iteration_bounds = array<i64: 2>, scalar_prefetch = 0 : i64, scratch_operands = 0 : i64, tpu.core_type = #tpu.core_type<tc>, window_params = [{transform_indices = @transform_0, window_bounds = array<i64: 1, 32, 16>}, {pipeline_mode = #tpu.pipeline_mode<synchronous>, transform_indices = @transform_1, window_bounds = array<i64: 32, 4>}, {pipeline_mode = #tpu.pipeline_mode<synchronous>, transform_indices = @transform_2, window_bounds = array<i64: 1, 4>}, {pipeline_mode = #tpu.pipeline_mode<synchronous>, transform_indices = @transform_3, window_bounds = array<i64: 4, 32>}, {pipeline_mode = #tpu.pipeline_mode<synchronous>, transform_indices = @transform_4, window_bounds = array<i64: 1, 32>}, {transform_indices = @transform_5, window_bounds = array<i64: 1, 32, 16>}]} {
    %c0 = arith.constant 0 : index
    %c0_0 = arith.constant 0 : index
    %c0_1 = arith.constant 0 : index
    %0 = vector.load %arg1[%c0, %c0_0, %c0_1] : memref<1x32x16xf32, #tpu.memory_space<vmem>>, vector<1x32x16xf32>
    %cst = arith.constant dense<0.000000e+00> : vector<1x32xf32>
    %1 = vector.multi_reduction <add>, %0, %cst [2] : vector<1x32x16xf32> to vector<1x32xf32>
    %cst_2 = arith.constant 1.600000e+01 : f32
    %2 = vector.broadcast %cst_2 : f32 to vector<1x32xf32>
    %3 = arith.divf %1, %2 : vector<1x32xf32>
    %cst_3 = arith.constant dense<0xFF800000> : vector<1x32xf32>
    %4 = vector.multi_reduction <maximumf>, %0, %cst_3 [2] : vector<1x32x16xf32> to vector<1x32xf32>
    %5 = tpu.concatenate %3, %4 in 0 : vector<1x32xf32>, vector<1x32xf32> -> vector<2x32xf32>
    %c0_4 = arith.constant 0 : index
    %c0_5 = arith.constant 0 : index
    %6 = vector.load %arg2[%c0_4, %c0_5] : memref<32x4xf32, #tpu.memory_space<vmem>>, vector<32x4xf32>
    %cst_6 = arith.constant dense<0.000000e+00> : vector<2x4xf32>
    %7 = tpu.matmul %5, %6, %cst_6 {dimension_numbers = #tpu.dot_dimension_numbers<[1], [0], [0], [1], [0, 0, 1, 1], [], []>} : vector<2x32xf32>, vector<32x4xf32>, vector<2x4xf32> -> vector<2x4xf32>
    %c0_7 = arith.constant 0 : index
    %c0_8 = arith.constant 0 : index
    %8 = vector.load %arg3[%c0_7, %c0_8] : memref<1x4xf32, #tpu.memory_space<vmem>>, vector<1x4xf32>
    %9 = vector.broadcast %8 : vector<1x4xf32> to vector<2x4xf32>
    %10 = arith.addf %7, %9 : vector<2x4xf32>
    %cst_9 = arith.constant 0.000000e+00 : f32
    %11 = vector.broadcast %cst_9 : f32 to vector<2x4xf32>
    %12 = arith.maximumf %10, %11 : vector<2x4xf32>
    %c0_10 = arith.constant 0 : index
    %c0_11 = arith.constant 0 : index
    %13 = vector.load %arg4[%c0_10, %c0_11] : memref<4x32xf32, #tpu.memory_space<vmem>>, vector<4x32xf32>
    %cst_12 = arith.constant dense<0.000000e+00> : vector<2x32xf32>
    %14 = tpu.matmul %12, %13, %cst_12 {dimension_numbers = #tpu.dot_dimension_numbers<[1], [0], [0], [1], [0, 0, 1, 1], [], []>} : vector<2x4xf32>, vector<4x32xf32>, vector<2x32xf32> -> vector<2x32xf32>
    %c0_13 = arith.constant 0 : index
    %c0_14 = arith.constant 0 : index
    %15 = vector.load %arg5[%c0_13, %c0_14] : memref<1x32xf32, #tpu.memory_space<vmem>>, vector<1x32xf32>
    %16 = vector.broadcast %15 : vector<1x32xf32> to vector<2x32xf32>
    %17 = arith.addf %14, %16 : vector<2x32xf32>
    %18 = vector.extract_strided_slice %17 {offsets = [0, 0], sizes = [1, 32], strides = [1, 1]} : vector<2x32xf32> to vector<1x32xf32>
    %19 = vector.extract_strided_slice %17 {offsets = [1, 0], sizes = [1, 32], strides = [1, 1]} : vector<2x32xf32> to vector<1x32xf32>
    %20 = arith.addf %18, %19 : vector<1x32xf32>
    %21 = arith.negf %20 : vector<1x32xf32>
    %22 = math.exp %21 : vector<1x32xf32>
    %cst_15 = arith.constant 1.000000e+00 : f32
    %23 = vector.broadcast %cst_15 : f32 to vector<1x32xf32>
    %24 = arith.addf %23, %22 : vector<1x32xf32>
    %25 = arith.divf %23, %24 : vector<1x32xf32>
    %26 = vector.shape_cast %25 : vector<1x32xf32> to vector<1x32x1xf32>
    %27 = vector.broadcast %26 : vector<1x32x1xf32> to vector<1x32x16xf32>
    %28 = arith.mulf %0, %27 : vector<1x32x16xf32>
    %c0_16 = arith.constant 0 : index
    %c0_17 = arith.constant 0 : index
    %c0_18 = arith.constant 0 : index
    %29 = vector.load %arg6[%c0_16, %c0_17, %c0_18] : memref<1x32x16xf32, #tpu.memory_space<vmem>>, vector<1x32x16xf32>
    tpu.vector_store %arg6[%c0_16, %c0_17, %c0_18], %28 {strides = array<i32>} : memref<1x32x16xf32, #tpu.memory_space<vmem>>, vector<1x32x16xf32>,
    return
  }
  func.func @transform_0(%arg0: i32) -> (i32, i32, i32) {
    %c0_i32 = arith.constant 0 : i32
    %c0_i32_0 = arith.constant 0 : i32
    %c0_i32_1 = arith.constant 0 : i32
    return %arg0, %c0_i32, %c0_i32_0 : i32, i32, i32
  }
  func.func @transform_1(%arg0: i32) -> (i32, i32) {
    %c0_i32 = arith.constant 0 : i32
    %c0_i32_0 = arith.constant 0 : i32
    %c0_i32_1 = arith.constant 0 : i32
    return %c0_i32, %c0_i32_0 : i32, i32
  }
  func.func @transform_2(%arg0: i32) -> (i32, i32) {
    %c0_i32 = arith.constant 0 : i32
    %c0_i32_0 = arith.constant 0 : i32
    %c0_i32_1 = arith.constant 0 : i32
    return %c0_i32, %c0_i32_0 : i32, i32
  }
  func.func @transform_3(%arg0: i32) -> (i32, i32) {
    %c0_i32 = arith.constant 0 : i32
    %c0_i32_0 = arith.constant 0 : i32
    %c0_i32_1 = arith.constant 0 : i32
    return %c0_i32, %c0_i32_0 : i32, i32
  }
  func.func @transform_4(%arg0: i32) -> (i32, i32) {
    %c0_i32 = arith.constant 0 : i32
    %c0_i32_0 = arith.constant 0 : i32
    %c0_i32_1 = arith.constant 0 : i32
    return %c0_i32, %c0_i32_0 : i32, i32
  }
  func.func @transform_5(%arg0: i32) -> (i32, i32, i32) {
    %c0_i32 = arith.constant 0 : i32
    %c0_i32_0 = arith.constant 0 : i32
    %c0_i32_1 = arith.constant 0 : i32
    return %arg0, %c0_i32, %c0_i32_0 : i32, i32, i32
  }
}

</mosaic_0001>

<llo_original>
// kernel: tpu_custom_call.1
$region0: #{tpu_custom_call.1}
  #allocation0 [shape = 'u32[]', space=smem, size = 0x4, offset = 0x4, fixed_abs, tag = 'smem constant byte address 0x4 - core index']
  #allocation1 [shape = 'u32[144,128]{1,0:T(1,128)}', space=vmem, size = 0x12000, scoped, tag = 'internal scratch']
  %s0 = inlined_call_operand.vmem [shape: f32[2,32,16], index: 0, kind: input, shape index: {}]
  %s1 = inlined_call_operand.vmem [shape: f32[32,4], index: 1, kind: input, shape index: {}]
  %s2 = inlined_call_operand.vmem [shape: f32[1,4], index: 2, kind: input, shape index: {}]
  %s3 = inlined_call_operand.vmem [shape: f32[4,32], index: 3, kind: input, shape index: {}]
  %s4 = inlined_call_operand.vmem [shape: f32[1,32], index: 4, kind: input, shape index: {}]
  %s5 = inlined_call_operand.vmem [shape: f32[2,32,16], index: 5, kind: output, shape index: {}]
  %s6 = sld [smem:[#allocation0]]
  $region53: #{tpu_custom_call.1} parent=0
    _
  %s8 = ssub.s32 1, %s6
  %s9 = scalar_select 0, %s8, %s6
  loop: start=0, step=1, limit=4
  $region2: #{tpu_custom_call.1} parent=0 // loop_pre_header
    _
  $region3: #{tpu_custom_call.1} parent=0 // loop_header
    %s11 = sphi 0, %s15
    %p12 = scmp.ge.s32.totalorder %s11, 4
    %s21 = sphi 0, %s23
    %s24 = sphi 0, %s21
    %s25 = sphi 0, %s24
    %s41 = sphi 0, %s25
    %s45 = sphi 0, %s45
    %s47 = sphi 0, %s45
    %s48 = sphi 0, %s47
    %s62 = sphi 0, %s48
    %s66 = sphi 0, %s66
    %s68 = sphi 0, %s66
    %s69 = sphi 0, %s68
    %s83 = sphi 0, %s69
    %s87 = sphi 0, %s87
    %s89 = sphi 0, %s87
    %s90 = sphi 0, %s89
    %s104 = sphi 0, %s90
    %s108 = sphi 0, %s108
    %s110 = sphi 0, %s108
    %s111 = sphi 0, %s110
    %s125 = sphi 0, %s111
    %s131 = sphi 0, %s133
    %s134 = sphi 0, %s131
    %s135 = sphi 0, %s134
    %s151 = sphi 0, %s135
  $region4: #{tpu_custom_call.1} parent=0 // loop_header_branch
    %14 = sbr.rel (%p12) target = $region8
  $region5: #{tpu_custom_call.1} parent=0 // loop_body
    %s16 = ssub.s32 %s11, 1
    %s17 = ssub.s32 %s11, 2
    %s18 = sadd.s32 %s11, 1
    %s19 = ssub.s32 %s11, %s18
    %p20 = scmp.eq.s32.totalorder %s19, 0
    %s22 = sadd.s32 %s21, 1
    %s23 = scalar_select %p20, %s21, %s22
    %p26 = pneg %p20
    %p27 = scmp.eq.s32.totalorder %s11, 1
    %p28 = por %p26, %p27
    %p29 = scmp.ne.s32.totalorder %s21, %s24
    %p30 = scmp.eq.s32.totalorder %s11, 0
    %p31 = por %p29, %p30
    %p32 = scmp.ne.s32.totalorder %s21, %s24
    %p33 = scmp.eq.s32.totalorder %s16, 1
    %p34 = por %p32, %p33
    %p35 = scmp.ne.s32.totalorder %s24, %s25
    %p36 = scmp.eq.s32.totalorder %s16, 0
    %p37 = por %p35, %p36
    %p38 = scmp.ne.s32.totalorder %s24, %s25
    %p39 = scmp.eq.s32.totalorder %s17, 1
    %p40 = por %p38, %p39
    %p42 = scmp.ne.s32.totalorder %s25, %s41
    %p43 = scmp.eq.s32.totalorder %s17, 0
    %p44 = por %p42, %p43
    %s46 = sadd.s32 %s45, 1
    %p49 = scmp.eq.s32.totalorder %s11, 1
    %p50 = scmp.ne.s32.totalorder %s45, %s47
    %p51 = scmp.eq.s32.totalorder %s11, 0
    %p52 = por %p50, %p51
    %p53 = scmp.ne.s32.totalorder %s45, %s47
    %p54 = scmp.eq.s32.totalorder %s16, 1
    %p55 = por %p53, %p54
    %p56 = scmp.ne.s32.totalorder %s47, %s48
    %p57 = scmp.eq.s32.totalorder %s16, 0
    %p58 = por %p56, %p57
    %p59 = scmp.ne.s32.totalorder %s47, %s48
    %p60 = scmp.eq.s32.totalorder %s17, 1
    %p61 = por %p59, %p60
    %p63 = scmp.ne.s32.totalorder %s48, %s62
    %p64 = scmp.eq.s32.totalorder %s17, 0
    %p65 = por %p63, %p64
    %s67 = sadd.s32 %s66, 1
    %p70 = scmp.eq.s32.totalorder %s11, 1
    %p71 = scmp.ne.s32.totalorder %s66, %s68
    %p72 = scmp.eq.s32.totalorder %s11, 0
    %p73 = por %p71, %p72
    %p74 = scmp.ne.s32.totalorder %s66, %s68
    %p75 = scmp.eq.s32.totalorder %s16, 1
    %p76 = por %p74, %p75
    %p77 = scmp.ne.s32.totalorder %s68, %s69
    %p78 = scmp.eq.s32.totalorder %s16, 0
    %p79 = por %p77, %p78
    %p80 = scmp.ne.s32.totalorder %s68, %s69
    %p81 = scmp.eq.s32.totalorder %s17, 1
    %p82 = por %p80, %p81
    %p84 = scmp.ne.s32.totalorder %s69, %s83
    %p85 = scmp.eq.s32.totalorder %s17, 0
    %p86 = por %p84, %p85
    %s88 = sadd.s32 %s87, 1
    %p91 = scmp.eq.s32.totalorder %s11, 1
    %p92 = scmp.ne.s32.totalorder %s87, %s89
    %p93 = scmp.eq.s32.totalorder %s11, 0
    %p94 = por %p92, %p93
    %p95 = scmp.ne.s32.totalorder %s87, %s89
    %p96 = scmp.eq.s32.totalorder %s16, 1
    %p97 = por %p95, %p96
    %p98 = scmp.ne.s32.totalorder %s89, %s90
    %p99 = scmp.eq.s32.totalorder %s16, 0
    %p100 = por %p98, %p99
    %p101 = scmp.ne.s32.totalorder %s89, %s90
    %p102 = scmp.eq.s32.totalorder %s17, 1
    %p103 = por %p101, %p102
    %p105 = scmp.ne.s32.totalorder %s90, %s104
    %p106 = scmp.eq.s32.totalorder %s17, 0
    %p107 = por %p105, %p106
    %s109 = sadd.s32 %s108, 1
    %p112 = scmp.eq.s32.totalorder %s11, 1
    %p113 = scmp.ne.s32.totalorder %s108, %s110
    %p114 = scmp.eq.s32.totalorder %s11, 0
    %p115 = por %p113, %p114
    %p116 = scmp.ne.s32.totalorder %s108, %s110
    %p117 = scmp.eq.s32.totalorder %s16, 1
    %p118 = por %p116, %p117
    %p119 = scmp.ne.s32.totalorder %s110, %s111
    %p120 = scmp.eq.s32.totalorder %s16, 0
    %p121 = por %p119, %p120
    %p122 = scmp.ne.s32.totalorder %s110, %s111
    %p123 = scmp.eq.s32.totalorder %s17, 1
    %p124 = por %p122, %p123
    %p126 = scmp.ne.s32.totalorder %s111, %s125
    %p127 = scmp.eq.s32.totalorder %s17, 0
    %p128 = por %p126, %p127
    %s129 = ssub.s32 %s11, %s18
    %p130 = scmp.eq.s32.totalorder %s129, 0
    %s132 = sadd.s32 %s131, 1
    %s133 = scalar_select %p130, %s131, %s132
    %p136 = pneg %p130
    %p137 = scmp.eq.s32.totalorder %s11, 1
    %p138 = por %p136, %p137
    %p139 = scmp.ne.s32.totalorder %s131, %s134
    %p140 = scmp.eq.s32.totalorder %s11, 0
    %p141 = por %p139, %p140
    %p142 = scmp.ne.s32.totalorder %s131, %s134
    %p143 = scmp.eq.s32.totalorder %s16, 1
    %p144 = por %p142, %p143
    %p145 = scmp.ne.s32.totalorder %s134, %s135
    %p146 = scmp.eq.s32.totalorder %s16, 0
    %p147 = por %p145, %p146
    %p148 = scmp.ne.s32.totalorder %s134, %s135
    %p149 = scmp.eq.s32.totalorder %s17, 1
    %p150 = por %p148, %p149
    %p152 = scmp.ne.s32.totalorder %s135, %s151
    %p153 = scmp.eq.s32.totalorder %s17, 0
    %p154 = por %p152, %p153
    %p155 = scmp.le.s32.totalorder 1, %s11
    %p156 = scmp.lt.s32.totalorder %s11, 3
    %p157 = pnand %p155, %p156
    %p158 = pneg %p157
    // Predicated region
    $region9: #{tpu_custom_call.1} parent=5 // pred_check
      _
    $region10: #{tpu_custom_call.1} parent=5 // pred_check_branch
      %160 = sbr.rel (%p157) target = $region12
    $region11: #{tpu_custom_call.1} parent=5 // pred_region
      %s161 = ssub.s32 %s11, 1
      // Predicated region
      $region13: #{tpu_custom_call.1} parent=11 // pred_check
        %p162 = pneg %p58
      $region14: #{tpu_custom_call.1} parent=11 // pred_check_branch
        %164 = sbr.rel (%p162) target = $region16
      $region15: #{tpu_custom_call.1} parent=11 // pred_region
        _
      $region16: #{tpu_custom_call.1} parent=11 // pred_fallthru
        _
      // Predicated region
      $region17: #{tpu_custom_call.1} parent=11 // pred_check
        %p165 = pneg %p79
      $region18: #{tpu_custom_call.1} parent=11 // pred_check_branch
        %167 = sbr.rel (%p165) target = $region20
      $region19: #{tpu_custom_call.1} parent=11 // pred_region
        _
      $region20: #{tpu_custom_call.1} parent=11 // pred_fallthru
        _
      // Predicated region
      $region21: #{tpu_custom_call.1} parent=11 // pred_check
        %p168 = pneg %p100
      $region22: #{tpu_custom_call.1} parent=11 // pred_check_branch
        %170 = sbr.rel (%p168) target = $region24
      $region23: #{tpu_custom_call.1} parent=11 // pred_region
        _
      $region24: #{tpu_custom_call.1} parent=11 // pred_fallthru
        _
      // Predicated region
      $region25: #{tpu_custom_call.1} parent=11 // pred_check
        %p171 = pneg %p121
      $region26: #{tpu_custom_call.1} parent=11 // pred_check_branch
        %173 = sbr.rel (%p171) target = $region28
      $region27: #{tpu_custom_call.1} parent=11 // pred_region
        _
      $region28: #{tpu_custom_call.1} parent=11 // pred_fallthru
        _
    $region12: #{tpu_custom_call.1} parent=5 // pred_fallthru
      _
    %p174 = scmp.lt.s32.totalorder %s11, 2
    // Predicated region
    $region29: #{tpu_custom_call.1} parent=5 // pred_check
      %p175 = pneg %p174
    $region30: #{tpu_custom_call.1} parent=5 // pred_check_branch
      %177 = sbr.rel (%p175) target = $region32
    $region31: #{tpu_custom_call.1} parent=5 // pred_region
      // Predicated region
      $region33: #{tpu_custom_call.1} parent=31 // pred_check
        %p178 = pneg %p31
      $region34: #{tpu_custom_call.1} parent=31 // pred_check_branch
        %180 = sbr.rel (%p178) target = $region36
      $region35: #{tpu_custom_call.1} parent=31 // pred_region
        %p181 = scmp.lt.s32.totalorder %s11, 1
        %s182 = scalar_select %p181, %s11, 1
        %s183 = smul.addr %s182, 4
        %s184 = smul.addr %s183, 8
        %s185 = scalar_lea.vmem %s0, %s184
      $region36: #{tpu_custom_call.1} parent=31 // pred_fallthru
        _
    $region32: #{tpu_custom_call.1} parent=5 // pred_fallthru
      _
    %p186 = scmp.le.s32.totalorder 1, %s11
    %p187 = scmp.lt.s32.totalorder %s11, 3
    %p188 = pnand %p186, %p187
    %p189 = pneg %p188
    // Predicated region
    $region37: #{tpu_custom_call.1} parent=5 // pred_check
      _
    $region38: #{tpu_custom_call.1} parent=5 // pred_check_branch
      %191 = sbr.rel (%p188) target = $region40
    $region39: #{tpu_custom_call.1} parent=5 // pred_region
      %s192 = ssub.s32 %s11, 1
      %p193 = scmp.lt.s32.totalorder %s16, 1
      %s194 = scalar_select %p193, %s16, 1
      %s195 = smul.addr %s194, 4
      %s196 = smul.addr %s195, 8
      %s197 = scalar_lea.vmem %s0, %s196
      %p198 = pneg %p37
      %p199 = pneg %p34
      %p200 = pneg %p58
      %p201 = pneg %p55
      %p202 = pneg %p79
      %p203 = pneg %p76
      %p204 = pneg %p100
      %p205 = pneg %p97
      %p206 = pneg %p121
      %p207 = pneg %p118
      %p208 = pneg %p147
      %p209 = pneg %p144
      %p210 = scmp.lt.s32.totalorder %s16, 1
      %s211 = scalar_select %p210, %s16, 1
      %s212 = smul.addr %s211, 4
      %s213 = smul.addr %s212, 8
      %s214 = scalar_lea.vmem %s5, %s213
      %p215 = scmp.lt.s32.totalorder %s16, 1
      %s216 = scalar_select %p215, %s16, 1
      %s217 = smul.addr %s216, 4
      %s218 = smul.addr %s217, 8
      %s219 = scalar_lea.vmem %s0, %s218
      %p220 = scmp.lt.s32.totalorder %s16, 1
      %s221 = scalar_select %p220, %s16, 1
      %s222 = smul.addr %s221, 4
      %s223 = smul.addr %s222, 8
      %s224 = scalar_lea.vmem %s5, %s223
      %v225 = vld [vmem:[%s219] sm:$0xff]
      %v226 = vld [vmem:[%s219 + $0x8] sm:$0xff]
      %v227 = vld [vmem:[%s219 + $0x10] sm:$0xff]
      %v228 = vld [vmem:[%s219 + $0x18] sm:$0xff]
      %vm229 = vcmask 130048
      %v230 = vsel %vm229, %v225, 0.0
      %231 = vadd.xlane.f32.xlu0 %v230
      %v232 = vpop.xlane.xlu0 %231
      %v233 = vsel %vm229, %v226, 0.0
      %234 = vadd.xlane.f32.xlu0 %v233
      %v235 = vpop.xlane.xlu0 %234
      %v236 = vsel %vm229, %v227, 0.0
      %237 = vadd.xlane.f32.xlu0 %v236
      %v238 = vpop.xlane.xlu0 %237
      %v239 = vsel %vm229, %v228, 0.0
      %240 = vadd.xlane.f32.xlu0 %v239
      %v241 = vpop.xlane.xlu0 %240
      %v242 = vrcp.pop 16.0
      %v243 = vmul.f32 %v232, %v242
      %v244 = vmul.f32 %v235, %v242
      %v245 = vmul.f32 %v238, %v242
      %v246 = vmul.f32 %v241, %v242
      %v247 = vsel %vm229, %v225, -inf
      %248 = vmax.xlane.f32.xlu0 %v247
      %v249 = vpop.xlane.xlu0 %248
      %v250 = vsel %vm229, %v226, -inf
      %251 = vmax.xlane.f32.xlu0 %v250
      %v252 = vpop.xlane.xlu0 %251
      %v253 = vsel %vm229, %v227, -inf
      %254 = vmax.xlane.f32.xlu0 %v253
      %v255 = vpop.xlane.xlu0 %254
      %v256 = vsel %vm229, %v228, -inf
      %257 = vmax.xlane.f32.xlu0 %v256
      %v258 = vpop.xlane.xlu0 %257
      %v263 = vlaneseq
      %v264 = vand.u32 %v263, 127
      %v265 = vlaneseq
      %v266 = vshrl.u32 %v265, 7
      %v267 = vsub.s32 %v264, %v266
      %v268 = vrot.slane %v243, %v267
      %v269 = vadd.s32 %v264, 4294967288
      %v270 = vlaneseq
      %v271 = vshrl.u32 %v270, 7
      %v272 = vsub.s32 %v269, %v271
      %v273 = vrot.slane %v244, %v272
      %vm274 = vcmask 130112
      %v275 = vsel %vm274, %v273, %v268
      %v276 = vadd.s32 %v264, 4294967280
      %v277 = vlaneseq
      %v278 = vshrl.u32 %v277, 7
      %v279 = vsub.s32 %v276, %v278
      %v280 = vrot.slane %v245, %v279
      %vm281 = vcmask 195712
      %v282 = vsel %vm281, %v280, %v275
      %v283 = vadd.s32 %v264, 4294967272
      %v284 = vlaneseq
      %v285 = vshrl.u32 %v284, 7
      %v286 = vsub.s32 %v283, %v285
      %v287 = vrot.slane %v246, %v286
      %vm288 = vcmask 261312
      %v289 = vsel %vm288, %v287, %v282
      %v295 = vlaneseq
      %v296 = vshrl.u32 %v295, 7
      %v297 = vsub.s32 %v264, %v296
      %v298 = vrot.slane %v249, %v297
      %v299 = vlaneseq
      %v300 = vshrl.u32 %v299, 7
      %v301 = vsub.s32 %v269, %v300
      %v302 = vrot.slane %v252, %v301
      %v303 = vsel %vm274, %v302, %v298
      %v304 = vlaneseq
      %v305 = vshrl.u32 %v304, 7
      %v306 = vsub.s32 %v276, %v305
      %v307 = vrot.slane %v255, %v306
      %v308 = vsel %vm281, %v307, %v303
      %v309 = vlaneseq
      %v310 = vshrl.u32 %v309, 7
      %v311 = vsub.s32 %v283, %v310
      %v312 = vrot.slane %v258, %v311
      %v313 = vsel %vm288, %v312, %v308
      %vm315 = vcmask 1040384
      %v316 = vsel %vm315, %v289, %v313
      %v317 = vld [vmem:[%s1] sm:$0xff]
      %v318 = vld [vmem:[%s1 + $0x8] sm:$0xff]
      %v319 = vld [vmem:[%s1 + $0x10] sm:$0xff]
      %v320 = vld [vmem:[%s1 + $0x18] sm:$0xff]
      %v321 = vld [vmem:[%s2] sm:$0x1]
      %v323 = vlaneseq
      %v324 = vshrl.u32 %v323, 7
      %v325 = vsub.s32 0, %v324
      %v326 = vrot.slane %v321, %v325
      %vm328 = vcmask 261120
      %v330 = vsel %vm328, %v316, 0
      %332 = vmatprep.subr.mxu0 0.0
      %333 = vmatpush1.msra.mxu0 %v317
      %334 = vmatprep.subr.mxu0 0.0
      %335 = vmatpush1.msra.mxu0 %v318
      %336 = vmatprep.subr.mxu0 0.0
      %337 = vmatpush1.msra.mxu0 %v319
      %338 = vmatprep.subr.mxu0 0.0
      %339 = vmatpush1.msra.mxu0 %v320
      %340 = vmatprep.subr.mxu0 0.0
      %341 = vmatpush1.msra.mxu0 0.0
      %342 = vmatprep.subr.mxu0 0.0
      %343 = vmatpush1.msra.mxu0 0.0
      %344 = vmatprep.subr.mxu0 0.0
      %345 = vmatpush1.msra.mxu0 0.0
      %346 = vmatprep.subr.mxu0 0.0
      %347 = vmatpush1.msra.mxu0 0.0
      %348 = vmatprep.subr.mxu0 0.0
      %349 = vmatpush1.msra.mxu0 0.0
      %350 = vmatprep.subr.mxu0 0.0
      %351 = vmatpush1.msra.mxu0 0.0
      %352 = vmatprep.subr.mxu0 0.0
      %353 = vmatpush1.msra.mxu0 0.0
      %354 = vmatprep.subr.mxu0 0.0
      %355 = vmatpush1.msra.mxu0 0.0
      %356 = vmatprep.subr.mxu0 0.0
      %357 = vmatpush1.msra.mxu0 0.0
      %358 = vmatprep.subr.mxu0 0.0
      %359 = vmatpush1.msra.mxu0 0.0
      %360 = vmatprep.subr.mxu0 0.0
      %361 = vmatpush1.msra.mxu0 0.0
      %362 = vmatprep.subr.mxu0 0.0
      %363 = vmatpush1.msra.mxu0 0.0
      %364 = vmatprep.subr.mxu0 0.0
      %365 = vmatpush1.msra.mxu0 0.0
      %366 = vmatprep.subr.mxu0 0.0
      %367 = vmatpush1.msra.mxu0 0.0
      %368 = vmatprep.subr.mxu0 0.0
      %369 = vmatpush1.msra.mxu0 0.0
      %370 = vmatprep.subr.mxu0 0.0
      %371 = vmatpush1.msra.mxu0 0.0
      %372 = vmatprep.subr.mxu0 0.0
      %373 = vmatpush1.msra.mxu0 0.0
      %374 = vmatprep.subr.mxu0 0.0
      %375 = vmatpush1.msra.mxu0 0.0
      %376 = vmatprep.subr.mxu0 0.0
      %377 = vmatpush1.msra.mxu0 0.0
      %378 = vmatprep.subr.mxu0 0.0
      %379 = vmatpush1.msra.mxu0 0.0
      %380 = vmatprep.subr.mxu0 0.0
      %381 = vmatpush1.msra.mxu0 0.0
      %382 = vmatprep.subr.mxu0 0.0
      %383 = vmatpush1.msra.mxu0 0.0
      %384 = vmatprep.subr.mxu0 0.0
      %385 = vmatpush1.msra.mxu0 0.0
      %386 = vmatprep.subr.mxu0 0.0
      %387 = vmatpush1.msra.mxu0 0.0
      %388 = vmatprep.subr.mxu0 0.0
      %389 = vmatpush1.msra.mxu0 0.0
      %390 = vmatprep.subr.mxu0 0.0
      %391 = vmatpush1.msra.mxu0 0.0
      %392 = vmatprep.subr.mxu0 0.0
      %393 = vmatpush1.msra.mxu0 0.0
      %394 = vmatprep.subr.mxu0 0.0
      %395 = vmatpush1.msra.mxu0 0.0
      %396 = vmatprep.mubr.f32.mxu0 0.0
      %397 = vmatmul.mubr.f32.gmra.mrb[0].mxu0 %v330
      %v398 = vpop.f32.mrb[0].mxu0
      %v399 = vadd.f32 %v326, %v398
      %v400 = vpop.f32.mrb[0].mxu0
      %401 = vdwg.mxu0
      %v402 = vmax.f32 %v399, 0.0
      %v403 = vld [vmem:[%s3] sm:$0xf]
      %v404 = vld [vmem:[%s4] sm:$0x1]
      %v406 = vlaneseq
      %v407 = vshrl.u32 %v406, 7
      %v408 = vsub.s32 0, %v407
      %v409 = vrot.slane %v404, %v408
      %vm411 = vcmask 31744
      %v413 = vsel %vm411, %v402, 0
      %vm415 = vcmask 1043456
      %v417 = vsel %vm415, %v403, 0
      %419 = vmatprep.subr.mxu0 0.0
      %420 = vmatpush1.msra.mxu0 %v417
      %421 = vmatprep.subr.mxu0 0.0
      %422 = vmatpush1.msra.mxu0 0.0
      %423 = vmatprep.subr.mxu0 0.0
      %424 = vmatpush1.msra.mxu0 0.0
      %425 = vmatprep.subr.mxu0 0.0
      %426 = vmatpush1.msra.mxu0 0.0
      %427 = vmatprep.subr.mxu0 0.0
      %428 = vmatpush1.msra.mxu0 0.0
      %429 = vmatprep.subr.mxu0 0.0
      %430 = vmatpush1.msra.mxu0 0.0
      %431 = vmatprep.subr.mxu0 0.0
      %432 = vmatpush1.msra.mxu0 0.0
      %433 = vmatprep.subr.mxu0 0.0
      %434 = vmatpush1.msra.mxu0 0.0
      %435 = vmatprep.subr.mxu0 0.0
      %436 = vmatpush1.msra.mxu0 0.0
      %437 = vmatprep.subr.mxu0 0.0
      %438 = vmatpush1.msra.mxu0 0.0
      %439 = vmatprep.subr.mxu0 0.0
      %440 = vmatpush1.msra.mxu0 0.0
      %441 = vmatprep.subr.mxu0 0.0
      %442 = vmatpush1.msra.mxu0 0.0
      %443 = vmatprep.subr.mxu0 0.0
      %444 = vmatpush1.msra.mxu0 0.0
      %445 = vmatprep.subr.mxu0 0.0
      %446 = vmatpush1.msra.mxu0 0.0
      %447 = vmatprep.subr.mxu0 0.0
      %448 = vmatpush1.msra.mxu0 0.0
      %449 = vmatprep.subr.mxu0 0.0
      %450 = vmatpush1.msra.mxu0 0.0
      %451 = vmatprep.subr.mxu0 0.0
      %452 = vmatpush1.msra.mxu0 0.0
      %453 = vmatprep.subr.mxu0 0.0
      %454 = vmatpush1.msra.mxu0 0.0
      %455 = vmatprep.subr.mxu0 0.0
      %456 = vmatpush1.msra.mxu0 0.0
      %457 = vmatprep.subr.mxu0 0.0
      %458 = vmatpush1.msra.mxu0 0.0
      %459 = vmatprep.subr.mxu0 0.0
      %460 = vmatpush1.msra.mxu0 0.0
      %461 = vmatprep.subr.mxu0 0.0
      %462 = vmatpush1.msra.mxu0 0.0
      %463 = vmatprep.subr.mxu0 0.0
      %464 = vmatpush1.msra.mxu0 0.0
      %465 = vmatprep.subr.mxu0 0.0
      %466 = vmatpush1.msra.mxu0 0.0
      %467 = vmatprep.subr.mxu0 0.0
      %468 = vmatpush1.msra.mxu0 0.0
      %469 = vmatprep.subr.mxu0 0.0
      %470 = vmatpush1.msra.mxu0 0.0
      %471 = vmatprep.subr.mxu0 0.0
      %472 = vmatpush1.msra.mxu0 0.0
      %473 = vmatprep.subr.mxu0 0.0
      %474 = vmatpush1.msra.mxu0 0.0
      %475 = vmatprep.subr.mxu0 0.0
      %476 = vmatpush1.msra.mxu0 0.0
      %477 = vmatprep.subr.mxu0 0.0
      %478 = vmatpush1.msra.mxu0 0.0
      %479 = vmatprep.subr.mxu0 0.0
      %480 = vmatpush1.msra.mxu0 0.0
      %481 = vmatprep.subr.mxu0 0.0
      %482 = vmatpush1.msra.mxu0 0.0
      %483 = vmatprep.mubr.f32.mxu0 0.0
      %484 = vmatmul.mubr.f32.gmra.mrb[0].mxu0 %v413
      %v485 = vpop.f32.mrb[0].mxu0
      %v486 = vadd.f32 %v409, %v485
      %v487 = vpop.f32.mrb[0].mxu0
      %488 = vdwg.mxu0
      %v490 = vrot.slane %v486, 1
      %v492 = vadd.f32 %v486, %v490
      %v493 = vxor.u32 %v492, 2147483648
      %v494 = vmul.f32 %v493, 1.442695
      %v495 = vpow.pop %v494
      %v496 = vadd.f32 %v495, 1.0
      %v497 = vrcp.pop %v496
      %v498 = vmul.f32 1.0, %v497
      %v499 = vlaneseq
      %v500 = vshrl.u32 %v499, 7
      %v501 = vsub.s32 0, %v500
      %v502 = vrot.slane %v498, %v501
      %504 = vbcast.lane.b32.xlu0 %v502, 256
      %v505 = vpop.permute.xlu0 %504
      %s507 = sor.u32 256, 8
      %508 = vbcast.lane.b32.xlu0 %v502, %s507
      %v509 = vpop.permute.xlu0 %508
      %s511 = sor.u32 256, 16
      %512 = vbcast.lane.b32.xlu0 %v502, %s511
      %v513 = vpop.permute.xlu0 %512
      %s515 = sor.u32 256, 24
      %516 = vbcast.lane.b32.xlu0 %v502, %s515
      %v517 = vpop.permute.xlu0 %516
      %v518 = vmul.f32 %v225, %v505
      %v519 = vmul.f32 %v226, %v509
      %v520 = vmul.f32 %v227, %v513
      %v521 = vmul.f32 %v228, %v517
      %522 = vst.msk [vmem:[%s224] sm:$0xff] %vm229, %v518
      %523 = vst.msk [vmem:[%s224 + $0x8] sm:$0xff] %vm229, %v519
      %524 = vst.msk [vmem:[%s224 + $0x10] sm:$0xff] %vm229, %v520
      %525 = vst.msk [vmem:[%s224 + $0x18] sm:$0xff] %vm229, %v521
      %p526 = scmp.lt.s32.totalorder %s16, 1
      %s527 = scalar_select %p526, %s16, 1
      %s528 = smul.addr %s527, 4
      %s529 = smul.addr %s528, 8
      %s530 = scalar_lea.vmem %s5, %s529
      // Predicated region
      $region41: #{tpu_custom_call.1} parent=39 // pred_check
        %p531 = pneg %p144
      $region42: #{tpu_custom_call.1} parent=39 // pred_check_branch
        %533 = sbr.rel (%p531) target = $region44
      $region43: #{tpu_custom_call.1} parent=39 // pred_region
        _
      $region44: #{tpu_custom_call.1} parent=39 // pred_fallthru
        _
    $region40: #{tpu_custom_call.1} parent=5 // pred_fallthru
      _
    %p534 = scmp.le.s32.totalorder 2, %s11
    // Predicated region
    $region45: #{tpu_custom_call.1} parent=5 // pred_check
      %p535 = pneg %p534
    $region46: #{tpu_custom_call.1} parent=5 // pred_check_branch
      %537 = sbr.rel (%p535) target = $region48
    $region47: #{tpu_custom_call.1} parent=5 // pred_region
      %s538 = ssub.s32 %s11, 2
      // Predicated region
      $region49: #{tpu_custom_call.1} parent=47 // pred_check
        %p539 = pneg %p150
      $region50: #{tpu_custom_call.1} parent=47 // pred_check_branch
        %541 = sbr.rel (%p539) target = $region52
      $region51: #{tpu_custom_call.1} parent=47 // pred_region
        %p542 = scmp.lt.s32.totalorder %s17, 1
        %s543 = scalar_select %p542, %s17, 1
        %s544 = smul.addr %s543, 4
        %s545 = smul.addr %s544, 8
        %s546 = scalar_lea.vmem %s5, %s545
      $region52: #{tpu_custom_call.1} parent=47 // pred_fallthru
        _
    $region48: #{tpu_custom_call.1} parent=5 // pred_fallthru
      _
  $region6: #{tpu_custom_call.1} parent=0 // loop_footer
    %s15 = sadd.s32 1, %s11
  $region7: #{tpu_custom_call.1} parent=0 // loop_footer_branch
    %10 = sbr.rel target = $region3
  $region8: #{tpu_custom_call.1} parent=0 // loop_exit
    _

</llo_original>
